<compile_context>
chip_gen: v7x
topology: tpu7x:2x2x1
jax: 0.10.0
libtpu: 0.0.40
codegen_flags: <defaults>
</compile_context>

<pallas_src>
import functools

import jax
import jax.numpy as jnp
from jax.experimental import pallas as pl
from jax.experimental.pallas import tpu as pltpu


def _map_mlp_kernel(x_ref, p1_ref, p2_ref, o_ref, *, d_in, hidden):
    """One eval-mode MLP forward pass: out = relu(x @ W1 + b1) @ W2 + b2.

    p1 = [W1; b1] stacked on rows, p2 = [W2; b2] stacked on rows.  The row
    splits (at d_in and hidden) are static and sublane-aligned, so the slices
    are free views of the resident VMEM buffers.
    """
    x = x_ref[...]                       # (B, D_IN)
    w1 = p1_ref[:d_in, :]                # (D_IN, HIDDEN)
    b1 = p1_ref[d_in:, :]                # (1, HIDDEN)
    w2 = p2_ref[:hidden, :]              # (HIDDEN, D_OUT)
    b2 = p2_ref[hidden:, :]              # (1, D_OUT)

    h = jnp.dot(x, w1, preferred_element_type=jnp.float32)
    h = jnp.maximum(h + b1, 0.0)         # ReLU on the VPU, f32
    out = jnp.dot(h, w2, preferred_element_type=jnp.float32) + b2
    o_ref[...] = out.astype(o_ref.dtype)  # single (B, D_OUT) store


def pack_params(w1, b1, w2, b2):
    """Pack per-layer (W, b) into single buffers to cut input DMA count.

    Call once; do not re-pack per forward call.
    """
    p1 = jnp.concatenate([w1, b1.reshape(1, -1)], axis=0)   # (D_IN+1, HIDDEN)
    p2 = jnp.concatenate([w2, b2.reshape(1, -1)], axis=0)   # (HIDDEN+1, D_OUT)
    return p1, p2


def map_forward(x, packed_params, samples=1):
    """Pallas implementation of MAP.forward(input, samples).

    Runs the deterministic eval-mode forward exactly once in a grid-less
    kernel, then broadcasts along the samples axis in the wrapper (every
    sample is identical, matching torch.stack([model(input)]*samples)).
    """
    p1, p2 = packed_params
    B, d_in = x.shape
    hidden = p1.shape[1]
    d_out = p2.shape[1]
    assert p1.shape[0] == d_in + 1 and p2.shape[0] == hidden + 1
    # Aligned static slices inside the kernel (multiples of the 8-sublane tile).
    assert d_in % 8 == 0 and hidden % 8 == 0

    itemsize = jnp.dtype(x.dtype).itemsize
    flops = 2 * B * d_in * hidden + 2 * B * hidden * d_out
    bytes_accessed = (x.size + p1.size + p2.size + B * d_out) * itemsize

    single = pl.pallas_call(
        functools.partial(_map_mlp_kernel, d_in=d_in, hidden=hidden),
        out_shape=jax.ShapeDtypeStruct((B, d_out), x.dtype),
        # No grid: everything is tiny and lives whole in VMEM.
        in_specs=[
            pl.BlockSpec(memory_space=pltpu.MemorySpace.VMEM),  # x
            pl.BlockSpec(memory_space=pltpu.MemorySpace.VMEM),  # [W1; b1]
            pl.BlockSpec(memory_space=pltpu.MemorySpace.VMEM),  # [W2; b2]
        ],
        out_specs=pl.BlockSpec(memory_space=pltpu.MemorySpace.VMEM),
        cost_estimate=pl.CostEstimate(
            flops=flops, transcendentals=0, bytes_accessed=bytes_accessed),
    )(x, p1, p2)

    # Samples axis produced outside the kernel: zero redundant kernel
    # writeback; XLA materializes (or fuses away) the broadcast downstream.
    return jnp.broadcast_to(single[None, :, :], (samples, B, d_out))


def init_params(key, d_in, hidden, d_out, dtype=jnp.float32):
    """Deterministic parameter init (synthetic; no checkpoint loading)."""
    k1, k2, k3, k4 = jax.random.split(key, 4)
    w1 = jax.random.normal(k1, (d_in, hidden), dtype) * 0.1
    b1 = jax.random.normal(k2, (1, hidden), dtype) * 0.01
    w2 = jax.random.normal(k3, (hidden, d_out), dtype) * 0.1
    b2 = jax.random.normal(k4, (1, d_out), dtype) * 0.01
    return w1, b1, w2, b2


if __name__ == "__main__":
    B, D_IN, HIDDEN, D_OUT = 8, 32, 64, 16
    SAMPLES = 3

    key = jax.random.PRNGKey(0)
    kx, kp = jax.random.split(key)
    x = jax.random.normal(kx, (B, D_IN), jnp.float32)
    w1, b1, w2, b2 = init_params(kp, D_IN, HIDDEN, D_OUT)
    packed = pack_params(w1, b1, w2, b2)   # packed once, reused per call

    out = jax.block_until_ready(map_forward(x, packed, samples=SAMPLES))

    # Reference check against plain JAX (same math as the eval-mode MLP).
    ref_single = jnp.maximum(x @ w1 + b1, 0.0) @ w2 + b2
    ref = jnp.broadcast_to(ref_single[None], (SAMPLES, B, D_OUT))
    assert out.shape == (SAMPLES, B, D_OUT)
    assert jnp.allclose(out, ref, atol=1e-5, rtol=1e-5)

    print("KERNEL_OK")
</pallas_src>

<mosaic_0001>
module attributes {stable_mosaic.version = 11 : i64} {
  func.func @_map_mlp_kernel(%arg0: memref<8x32xf32, #tpu.memory_space<vmem>>, %arg1: memref<33x64xf32, #tpu.memory_space<vmem>>, %arg2: memref<65x16xf32, #tpu.memory_space<vmem>>, %arg3: memref<8x16xf32, #tpu.memory_space<vmem>>) attributes {dimension_semantics = [], scalar_prefetch = 0 : i64, scratch_operands = 0 : i64, tpu.core_type = #tpu.core_type<tc>} {
    %c0 = arith.constant 0 : index
    %c0_0 = arith.constant 0 : index
    %0 = vector.load %arg0[%c0, %c0_0] : memref<8x32xf32, #tpu.memory_space<vmem>>, vector<8x32xf32>
    %c0_1 = arith.constant 0 : index
    %c0_2 = arith.constant 0 : index
    %1 = vector.load %arg1[%c0_1, %c0_2] : memref<33x64xf32, #tpu.memory_space<vmem>>, vector<32x64xf32>
    %c32 = arith.constant 32 : index
    %c0_3 = arith.constant 0 : index
    %2 = vector.load %arg1[%c32, %c0_3] : memref<33x64xf32, #tpu.memory_space<vmem>>, vector<1x64xf32>
    %c0_4 = arith.constant 0 : index
    %c0_5 = arith.constant 0 : index
    %3 = vector.load %arg2[%c0_4, %c0_5] : memref<65x16xf32, #tpu.memory_space<vmem>>, vector<64x16xf32>
    %c64 = arith.constant 64 : index
    %c0_6 = arith.constant 0 : index
    %4 = vector.load %arg2[%c64, %c0_6] : memref<65x16xf32, #tpu.memory_space<vmem>>, vector<1x16xf32>
    %cst = arith.constant dense<0.000000e+00> : vector<8x64xf32>
    %5 = tpu.matmul %0, %1, %cst {dimension_numbers = #tpu.dot_dimension_numbers<[1], [0], [0], [1], [0, 0, 1, 1], [], []>} : vector<8x32xf32>, vector<32x64xf32>, vector<8x64xf32> -> vector<8x64xf32>
    %6 = vector.broadcast %2 : vector<1x64xf32> to vector<8x64xf32>
    %7 = arith.addf %5, %6 : vector<8x64xf32>
    %cst_7 = arith.constant 0.000000e+00 : f32
    %8 = vector.broadcast %cst_7 : f32 to vector<8x64xf32>
    %9 = arith.maximumf %7, %8 : vector<8x64xf32>
    %cst_8 = arith.constant dense<0.000000e+00> : vector<8x16xf32>
    %10 = tpu.matmul %9, %3, %cst_8 {dimension_numbers = #tpu.dot_dimension_numbers<[1], [0], [0], [1], [0, 0, 1, 1], [], []>} : vector<8x64xf32>, vector<64x16xf32>, vector<8x16xf32> -> vector<8x16xf32>
    %11 = vector.broadcast %4 : vector<1x16xf32> to vector<8x16xf32>
    %12 = arith.addf %10, %11 : vector<8x16xf32>
    %c0_9 = arith.constant 0 : index
    %c0_10 = arith.constant 0 : index
    %13 = vector.load %arg3[%c0_9, %c0_10] : memref<8x16xf32, #tpu.memory_space<vmem>>, vector<8x16xf32>
    tpu.vector_store %arg3[%c0_9, %c0_10], %12 {strides = array<i32>} : memref<8x16xf32, #tpu.memory_space<vmem>>, vector<8x16xf32>,
    return
  }
}

</mosaic_0001>

<llo_original>
// kernel: tpu_custom_call.1
$region0: #{tpu_custom_call.1}
  #allocation0 [shape = 'u32[]', space=smem, size = 0x4, offset = 0x4, fixed_abs, tag = 'smem constant byte address 0x4 - core index']
  #allocation1 [shape = 'u32[144,128]{1,0:T(1,128)}', space=vmem, size = 0x12000, scoped, tag = 'internal scratch']
  %s0 = inlined_call_operand.vmem [shape: f32[8,32], index: 0, kind: input, shape index: {}]
  %s1 = inlined_call_operand.vmem [shape: f32[33,64], index: 1, kind: input, shape index: {}]
  %s2 = inlined_call_operand.vmem [shape: f32[65,16], index: 2, kind: input, shape index: {}]
  %s3 = inlined_call_operand.hbm [shape: f32[8,16], index: 3, kind: output, shape index: {}]
  %s4 = sld [smem:[#allocation0]]
  $region22: #{tpu_custom_call.1} parent=0
    _
  %s6 = ssub.s32 1, %s4
  %s7 = scalar_select 0, %s6, %s4
  $region1: #{tpu_custom_call.1} parent=0
    #allocation2 [shape = 'u8[4096]{0}', space=vmem, size = 0x1000, scoped, tag = 'output window, operand 0, single buffered']
    #allocation3 [shape = 's32[1]{0}', space=sflag, size = 0x4, scoped, tag = 'scoped memory for tpu_custom_call.1']
    %8 = vsyncpa [#allocation3], 0
    // Predicated region
    $region2: #{tpu_custom_call.1} parent=1 // pred_check
      _
    $region3: #{tpu_custom_call.1} parent=1 // pred_check_branch
      %10 = sbr.rel (0) target = $region5
    $region4: #{tpu_custom_call.1} parent=1 // pred_region
      _
    $region5: #{tpu_custom_call.1} parent=1 // pred_fallthru
      _
    // Predicated region
    $region6: #{tpu_custom_call.1} parent=1 // pred_check
      _
    $region7: #{tpu_custom_call.1} parent=1 // pred_check_branch
      %12 = sbr.rel (0) target = $region9
    $region8: #{tpu_custom_call.1} parent=1 // pred_region
      _
    $region9: #{tpu_custom_call.1} parent=1 // pred_fallthru
      _
    // Predicated region
    $region10: #{tpu_custom_call.1} parent=1 // pred_check
      _
    $region11: #{tpu_custom_call.1} parent=1 // pred_check_branch
      %14 = sbr.rel (0) target = $region13
    $region12: #{tpu_custom_call.1} parent=1 // pred_region
      _
    $region13: #{tpu_custom_call.1} parent=1 // pred_fallthru
      _
    %v15 = vld [vmem:[%s0] sm:$0xff]
    %v16 = vld [vmem:[%s1] sm:$0xff]
    %v17 = vld [vmem:[%s1 + $0x8] sm:$0xff]
    %v18 = vld [vmem:[%s1 + $0x10] sm:$0xff]
    %v19 = vld [vmem:[%s1 + $0x18] sm:$0xff]
    %v20 = vld [vmem:[%s1 + $0x20] sm:$0x1]
    %v21 = vld [vmem:[%s2] sm:$0xff]
    %v22 = vld [vmem:[%s2 + $0x8] sm:$0xff]
    %v23 = vld [vmem:[%s2 + $0x10] sm:$0xff]
    %v24 = vld [vmem:[%s2 + $0x18] sm:$0xff]
    %v25 = vld [vmem:[%s2 + $0x20] sm:$0xff]
    %v26 = vld [vmem:[%s2 + $0x28] sm:$0xff]
    %v27 = vld [vmem:[%s2 + $0x30] sm:$0xff]
    %v28 = vld [vmem:[%s2 + $0x38] sm:$0xff]
    %v29 = vld [vmem:[%s2 + $0x40] sm:$0x1]
    %v30 = vlaneseq
    %v31 = vshrl.u32 %v30, 7
    %v32 = vsub.s32 0, %v31
    %v33 = vrot.slane %v20, %v32
    %vm34 = vcmask 261120
    %v36 = vsel %vm34, %v15, 0
    %38 = vmatprep.subr.mxu0 0.0
    %39 = vmatpush1.msra.mxu0 %v16
    %40 = vmatprep.subr.mxu0 0.0
    %41 = vmatpush1.msra.mxu0 %v17
    %42 = vmatprep.subr.mxu0 0.0
    %43 = vmatpush1.msra.mxu0 %v18
    %44 = vmatprep.subr.mxu0 0.0
    %45 = vmatpush1.msra.mxu0 %v19
    %46 = vmatprep.subr.mxu0 0.0
    %47 = vmatpush1.msra.mxu0 0.0
    %48 = vmatprep.subr.mxu0 0.0
    %49 = vmatpush1.msra.mxu0 0.0
    %50 = vmatprep.subr.mxu0 0.0
    %51 = vmatpush1.msra.mxu0 0.0
    %52 = vmatprep.subr.mxu0 0.0
    %53 = vmatpush1.msra.mxu0 0.0
    %54 = vmatprep.subr.mxu0 0.0
    %55 = vmatpush1.msra.mxu0 0.0
    %56 = vmatprep.subr.mxu0 0.0
    %57 = vmatpush1.msra.mxu0 0.0
    %58 = vmatprep.subr.mxu0 0.0
    %59 = vmatpush1.msra.mxu0 0.0
    %60 = vmatprep.subr.mxu0 0.0
    %61 = vmatpush1.msra.mxu0 0.0
    %62 = vmatprep.subr.mxu0 0.0
    %63 = vmatpush1.msra.mxu0 0.0
    %64 = vmatprep.subr.mxu0 0.0
    %65 = vmatpush1.msra.mxu0 0.0
    %66 = vmatprep.subr.mxu0 0.0
    %67 = vmatpush1.msra.mxu0 0.0
    %68 = vmatprep.subr.mxu0 0.0
    %69 = vmatpush1.msra.mxu0 0.0
    %70 = vmatprep.subr.mxu0 0.0
    %71 = vmatpush1.msra.mxu0 0.0
    %72 = vmatprep.subr.mxu0 0.0
    %73 = vmatpush1.msra.mxu0 0.0
    %74 = vmatprep.subr.mxu0 0.0
    %75 = vmatpush1.msra.mxu0 0.0
    %76 = vmatprep.subr.mxu0 0.0
    %77 = vmatpush1.msra.mxu0 0.0
    %78 = vmatprep.subr.mxu0 0.0
    %79 = vmatpush1.msra.mxu0 0.0
    %80 = vmatprep.subr.mxu0 0.0
    %81 = vmatpush1.msra.mxu0 0.0
    %82 = vmatprep.subr.mxu0 0.0
    %83 = vmatpush1.msra.mxu0 0.0
    %84 = vmatprep.subr.mxu0 0.0
    %85 = vmatpush1.msra.mxu0 0.0
    %86 = vmatprep.subr.mxu0 0.0
    %87 = vmatpush1.msra.mxu0 0.0
    %88 = vmatprep.subr.mxu0 0.0
    %89 = vmatpush1.msra.mxu0 0.0
    %90 = vmatprep.subr.mxu0 0.0
    %91 = vmatpush1.msra.mxu0 0.0
    %92 = vmatprep.subr.mxu0 0.0
    %93 = vmatpush1.msra.mxu0 0.0
    %94 = vmatprep.subr.mxu0 0.0
    %95 = vmatpush1.msra.mxu0 0.0
    %96 = vmatprep.subr.mxu0 0.0
    %97 = vmatpush1.msra.mxu0 0.0
    %98 = vmatprep.subr.mxu0 0.0
    %99 = vmatpush1.msra.mxu0 0.0
    %100 = vmatprep.subr.mxu0 0.0
    %101 = vmatpush1.msra.mxu0 0.0
    %102 = vmatprep.mubr.f32.mxu0 0.0
    %103 = vmatmul.mubr.f32.gmra.mrb[0].mxu0 %v36
    %v104 = vpop.f32.mrb[0].mxu0
    %v105 = vadd.f32 %v33, %v104
    %v106 = vpop.f32.mrb[0].mxu0
    %107 = vdwg.mxu0
    %v108 = vmax.f32 %v105, 0.0
    %v109 = vlaneseq
    %v110 = vshrl.u32 %v109, 7
    %v111 = vsub.s32 0, %v110
    %v112 = vrot.slane %v29, %v111
    %vm113 = vcmask 523264
    %v115 = vsel %vm113, %v108, 0
    %117 = vmatprep.subr.mxu0 0.0
    %118 = vmatpush1.msra.mxu0 %v21
    %119 = vmatprep.subr.mxu0 0.0
    %120 = vmatpush1.msra.mxu0 %v22
    %121 = vmatprep.subr.mxu0 0.0
    %122 = vmatpush1.msra.mxu0 %v23
    %123 = vmatprep.subr.mxu0 0.0
    %124 = vmatpush1.msra.mxu0 %v24
    %125 = vmatprep.subr.mxu0 0.0
    %126 = vmatpush1.msra.mxu0 %v25
    %127 = vmatprep.subr.mxu0 0.0
    %128 = vmatpush1.msra.mxu0 %v26
    %129 = vmatprep.subr.mxu0 0.0
    %130 = vmatpush1.msra.mxu0 %v27
    %131 = vmatprep.subr.mxu0 0.0
    %132 = vmatpush1.msra.mxu0 %v28
    %133 = vmatprep.subr.mxu0 0.0
    %134 = vmatpush1.msra.mxu0 0.0
    %135 = vmatprep.subr.mxu0 0.0
    %136 = vmatpush1.msra.mxu0 0.0
    %137 = vmatprep.subr.mxu0 0.0
    %138 = vmatpush1.msra.mxu0 0.0
    %139 = vmatprep.subr.mxu0 0.0
    %140 = vmatpush1.msra.mxu0 0.0
    %141 = vmatprep.subr.mxu0 0.0
    %142 = vmatpush1.msra.mxu0 0.0
    %143 = vmatprep.subr.mxu0 0.0
    %144 = vmatpush1.msra.mxu0 0.0
    %145 = vmatprep.subr.mxu0 0.0
    %146 = vmatpush1.msra.mxu0 0.0
    %147 = vmatprep.subr.mxu0 0.0
    %148 = vmatpush1.msra.mxu0 0.0
    %149 = vmatprep.subr.mxu0 0.0
    %150 = vmatpush1.msra.mxu0 0.0
    %151 = vmatprep.subr.mxu0 0.0
    %152 = vmatpush1.msra.mxu0 0.0
    %153 = vmatprep.subr.mxu0 0.0
    %154 = vmatpush1.msra.mxu0 0.0
    %155 = vmatprep.subr.mxu0 0.0
    %156 = vmatpush1.msra.mxu0 0.0
    %157 = vmatprep.subr.mxu0 0.0
    %158 = vmatpush1.msra.mxu0 0.0
    %159 = vmatprep.subr.mxu0 0.0
    %160 = vmatpush1.msra.mxu0 0.0
    %161 = vmatprep.subr.mxu0 0.0
    %162 = vmatpush1.msra.mxu0 0.0
    %163 = vmatprep.subr.mxu0 0.0
    %164 = vmatpush1.msra.mxu0 0.0
    %165 = vmatprep.subr.mxu0 0.0
    %166 = vmatpush1.msra.mxu0 0.0
    %167 = vmatprep.subr.mxu0 0.0
    %168 = vmatpush1.msra.mxu0 0.0
    %169 = vmatprep.subr.mxu0 0.0
    %170 = vmatpush1.msra.mxu0 0.0
    %171 = vmatprep.subr.mxu0 0.0
    %172 = vmatpush1.msra.mxu0 0.0
    %173 = vmatprep.subr.mxu0 0.0
    %174 = vmatpush1.msra.mxu0 0.0
    %175 = vmatprep.subr.mxu0 0.0
    %176 = vmatpush1.msra.mxu0 0.0
    %177 = vmatprep.subr.mxu0 0.0
    %178 = vmatpush1.msra.mxu0 0.0
    %179 = vmatprep.subr.mxu0 0.0
    %180 = vmatpush1.msra.mxu0 0.0
    %181 = vmatprep.mubr.f32.mxu0 0.0
    %182 = vmatmul.mubr.f32.gmra.mrb[0].mxu0 %v115
    %v183 = vpop.f32.mrb[0].mxu0
    %v184 = vadd.f32 %v112, %v183
    %v185 = vpop.f32.mrb[0].mxu0
    %186 = vdwg.mxu0
    %vm187 = vcmask 130048
    %188 = vst.msk [vmem:[#allocation2] sm:$0xff] %vm187, %v184
    // Predicated region
    $region14: #{tpu_custom_call.1} parent=1 // pred_check
      _
    $region15: #{tpu_custom_call.1} parent=1 // pred_check_branch
      %190 = sbr.rel (0) target = $region17
    $region16: #{tpu_custom_call.1} parent=1 // pred_region
      %s192 = ssub.s32 128, 128
      %193 = vsyncadd [#allocation3], %s192
      %s195 = sshll.u32 [#allocation2], 4
      %s196 = int_to_ptr.vmem [resolvable:$true] %s195
      %198 = dma.vmem_to_hbm [thread:$0]  %s196, 128, %s3, [#allocation3]
    $region17: #{tpu_custom_call.1} parent=1 // pred_fallthru
      _
    // Predicated region
    $region18: #{tpu_custom_call.1} parent=1 // pred_check
      _
    $region19: #{tpu_custom_call.1} parent=1 // pred_check_branch
      %200 = sbr.rel (0) target = $region21
    $region20: #{tpu_custom_call.1} parent=1 // pred_region
      %201 = dma.done [#allocation3], 128
    $region21: #{tpu_custom_call.1} parent=1 // pred_fallthru
      _
    %202 = vsyncpa [#allocation3], 1

</llo_original>
